<compile_context>
chip_gen: v7x
topology: tpu7x:2x2x1
jax: 0.10.0
libtpu: 0.0.40
codegen_flags: <defaults>
</compile_context>

<pallas_src>
import functools

import jax
import jax.numpy as jnp
from jax.experimental import pallas as pl
from jax.experimental.pallas import tpu as pltpu


def _round_up(x, m):
    return ((x + m - 1) // m) * m


def _attn_tile(T):
    """Attention tile (tq == tk, required by the DMA-elision index clamp)."""
    if T < 256:
        return _round_up(T, 8)      # single 8-aligned block
    if T % 256 == 0:
        return 256                  # fills the 256-wide MXU on v6e/v7x
    if T % 128 == 0:
        return 128                  # avoid padding when 128 divides T
    return 256                      # pad T up to a multiple of 256


def _rows_tile(R):
    """Row tile for the streaming QKV projection (big tiles -> HBM roofline)."""
    for t in (4096, 2048, 1024, 512, 256, 128, 64, 32, 16, 8):
        if R % t == 0:
            return t
    return R


# --------------------------------------------------------------------------
# Kernel 1: QKV projection, streaming over flattened (B*T) rows.
#   q/k/v are emitted unpadded (last dim = H = full array extent).
# --------------------------------------------------------------------------
def _qkv_proj_kernel(x_ref, wq_ref, wk_ref, wv_ref, q_ref, k_ref, v_ref):
    x = x_ref[...]                                   # (tm, D) bf16
    q_ref[...] = jnp.dot(x, wq_ref[...],
                         preferred_element_type=jnp.float32).astype(q_ref.dtype)
    k_ref[...] = jnp.dot(x, wk_ref[...],
                         preferred_element_type=jnp.float32).astype(k_ref.dtype)
    v_ref[...] = jnp.dot(x, wv_ref[...],
                         preferred_element_type=jnp.float32).astype(v_ref.dtype)


def _qkv_projection(x_flat, wq_s, wk, wv, tm):
    R, D = x_flat.shape
    H = wq_s.shape[1]
    out = jax.ShapeDtypeStruct((R, H), wq_s.dtype)
    return pl.pallas_call(
        _qkv_proj_kernel,
        out_shape=(out, out, out),
        grid=(R // tm,),
        in_specs=[
            pl.BlockSpec((tm, D), lambda i: (i, 0)),
            pl.BlockSpec((D, H), lambda i: (0, 0)),   # resident weights
            pl.BlockSpec((D, H), lambda i: (0, 0)),
            pl.BlockSpec((D, H), lambda i: (0, 0)),
        ],
        out_specs=(
            pl.BlockSpec((tm, H), lambda i: (i, 0)),
            pl.BlockSpec((tm, H), lambda i: (i, 0)),
            pl.BlockSpec((tm, H), lambda i: (i, 0)),
        ),
        compiler_params=pltpu.CompilerParams(
            dimension_semantics=("parallel",),
            vmem_limit_bytes=32 * 1024 * 1024,
        ),
    )(x_flat, wq_s, wk, wv)


# --------------------------------------------------------------------------
# Kernel 2: causal flash attention with online softmax (grid = B, qi, kv).
# --------------------------------------------------------------------------
def _flash_attn_kernel(q_ref, k_ref, v_ref, o_ref, m_sc, l_sc, acc_sc, *, tq, tk):
    qi = pl.program_id(1)
    kv = pl.program_id(2)
    nk = pl.num_programs(2)

    @pl.when(kv == 0)
    def _init():
        m_sc[...] = jnp.full(m_sc.shape, -jnp.inf, dtype=jnp.float32)
        l_sc[...] = jnp.zeros(l_sc.shape, dtype=jnp.float32)
        acc_sc[...] = jnp.zeros(acc_sc.shape, dtype=jnp.float32)

    def _online_softmax_step(apply_mask):
        q = q_ref[...]                     # (tq, H) bf16, 1/sqrt(H) pre-folded
        k = k_ref[...]                     # (tk, H) bf16
        # q @ k^T contracting the last dims -- no transpose copy.
        s = jax.lax.dot_general(
            q, k, (((1,), (1,)), ((), ())),
            preferred_element_type=jnp.float32)          # (tq, tk) f32
        if apply_mask:                     # diagonal-straddling block only
            row = qi * tq + jax.lax.broadcasted_iota(jnp.int32, (tq, tk), 0)
            col = kv * tk + jax.lax.broadcasted_iota(jnp.int32, (tq, tk), 1)
            s = jnp.where(row >= col, s, -jnp.inf)

        m_prev = m_sc[...]
        m_new = jnp.maximum(m_prev, jnp.max(s, axis=-1, keepdims=True))
        alpha = jnp.exp(m_prev - m_new)
        p = jnp.exp(s - m_new)
        l_sc[...] = alpha * l_sc[...] + jnp.sum(p, axis=-1, keepdims=True)
        acc_sc[...] = alpha * acc_sc[...] + jnp.dot(
            p.astype(jnp.bfloat16), v_ref[...],
            preferred_element_type=jnp.float32)
        m_sc[...] = m_new

    # With tq == tk: kv < qi  -> fully visible (no mask needed)
    #               kv == qi -> straddles the diagonal (iota mask)
    #               kv > qi  -> fully masked: compute skipped AND its DMA was
    #                           elided by the clamped k/v index_map.
    @pl.when(kv < qi)
    def _unmasked_block():
        _online_softmax_step(apply_mask=False)

    @pl.when(kv == qi)
    def _diagonal_block():
        _online_softmax_step(apply_mask=True)

    @pl.when(kv == nk - 1)
    def _finalize():
        inv_l = pl.reciprocal(l_sc[...], approx=True)
        o_ref[...] = (acc_sc[...] * inv_l).astype(o_ref.dtype)


def _flash_attention(q, k, v, tq, tk, out_dtype):
    assert tq == tk, "DMA-elision index clamp requires tq == tk"
    B, Tp, H = q.shape
    kernel = functools.partial(_flash_attn_kernel, tq=tq, tk=tk)
    return pl.pallas_call(
        kernel,
        out_shape=jax.ShapeDtypeStruct((B, Tp, H), out_dtype),
        grid=(B, Tp // tq, Tp // tk),
        in_specs=[
            pl.BlockSpec((None, tq, H), lambda b, qi, kv: (b, qi, 0)),
            # Clamp: for kv > qi the block is fully masked; fetching block
            # min(kv, qi) repeats the previous index so Pallas elides the DMA.
            pl.BlockSpec((None, tk, H),
                         lambda b, qi, kv: (b, jnp.minimum(kv, qi), 0)),
            pl.BlockSpec((None, tk, H),
                         lambda b, qi, kv: (b, jnp.minimum(kv, qi), 0)),
        ],
        out_specs=pl.BlockSpec((None, tq, H), lambda b, qi, kv: (b, qi, 0)),
        scratch_shapes=[
            pltpu.VMEM((tq, 1), jnp.float32),   # running row max
            pltpu.VMEM((tq, 1), jnp.float32),   # running softmax denominator
            pltpu.VMEM((tq, H), jnp.float32),   # output accumulator
        ],
        compiler_params=pltpu.CompilerParams(
            dimension_semantics=("parallel", "parallel", "arbitrary"),
            vmem_limit_bytes=32 * 1024 * 1024,
        ),
    )(q, k, v)


# --------------------------------------------------------------------------
# Public forward (eval-mode `Head`)
# --------------------------------------------------------------------------
def prepare_head_weights(wq, wk, wv, compute_dtype=jnp.bfloat16):
    """Fold the 1/sqrt(H) attention scale into wq and cast to the MXU compute
    dtype.  Pure function of the parameters -- hoist out of the forward path."""
    H = wq.shape[1]
    scale = float(H) ** -0.5
    return ((wq * scale).astype(compute_dtype),
            wk.astype(compute_dtype),
            wv.astype(compute_dtype))


def head_forward(x, prepared_weights):
    """x: (B, T, D); prepared_weights from prepare_head_weights -> (B, T, H)."""
    wq_s, wk, wv = prepared_weights
    B, T, D = x.shape
    H = wq_s.shape[1]
    compute_dtype = wq_s.dtype
    out_dtype = x.dtype

    t = _attn_tile(T)
    Tp = _round_up(T, t)

    xc = x.astype(compute_dtype)
    if Tp != T:
        # Zero-pad the sequence; padded KV positions lie strictly above the
        # causal diagonal for every real query row, so they never contribute,
        # and padded query rows are sliced away below.
        xc = jnp.pad(xc, ((0, 0), (0, Tp - T), (0, 0)))

    x_flat = xc.reshape(B * Tp, D)
    tm = _rows_tile(B * Tp)
    q, k, v = _qkv_projection(x_flat, wq_s, wk, wv, tm)    # 3x (B*Tp, H) bf16
    q = q.reshape(B, Tp, H)
    k = k.reshape(B, Tp, H)
    v = v.reshape(B, Tp, H)

    out = _flash_attention(q, k, v, tq=t, tk=t, out_dtype=out_dtype)
    if Tp != T:
        out = out[:, :T, :]
    return out


def head_forward_from_raw(x, wq, wk, wv):
    """Convenience wrapper taking raw (D, H) weights."""
    return head_forward(x, prepare_head_weights(wq, wk, wv))


def head_reference(x, wq, wk, wv):
    """Pure-JAX f32 reference mirroring the PyTorch forward (eval mode)."""
    q = x @ wq
    k = x @ wk
    v = x @ wv
    H = k.shape[-1]
    att = jnp.einsum("bth,bsh->bts", q, k) * (H ** -0.5)
    T = x.shape[1]
    mask = jnp.tril(jnp.ones((T, T), dtype=bool))
    att = jnp.where(mask[None, :, :], att, -jnp.inf)
    att = jax.nn.softmax(att, axis=-1)
    return att @ v


if __name__ == "__main__":
    def _run_case(B, T, D, H, seed):
        key = jax.random.PRNGKey(seed)
        kx, kq, kk, kv = jax.random.split(key, 4)
        x = jax.random.normal(kx, (B, T, D), dtype=jnp.float32)
        wq = jax.random.normal(kq, (D, H), dtype=jnp.float32) * (D ** -0.5)
        wk = jax.random.normal(kk, (D, H), dtype=jnp.float32) * (D ** -0.5)
        wv = jax.random.normal(kv, (D, H), dtype=jnp.float32) * (D ** -0.5)

        out = jax.block_until_ready(head_forward_from_raw(x, wq, wk, wv))
        ref = head_reference(x, wq, wk, wv)
        assert out.shape == (B, T, H)
        # Tolerance covers bf16 MXU operands + approx EUP reciprocal in the
        # softmax normalization (statistics and accumulation stay f32).
        assert jnp.allclose(out, ref, atol=5e-2, rtol=5e-2), (
            f"mismatch vs reference (case B={B},T={T}): "
            f"max abs diff {float(jnp.max(jnp.abs(out - ref)))}")

    # Small shapes consistent with the module: B=2, T=8 (<= C), D=32, H=16.
    _run_case(B=2, T=8, D=32, H=16, seed=0)
    # Multi-block case exercising fully-visible / diagonal / DMA-elided paths.
    _run_case(B=1, T=512, D=32, H=16, seed=0)

    print("KERNEL_OK")
</pallas_src>

<mosaic_0001>
module attributes {stable_mosaic.version = 11 : i64} {
  func.func @_qkv_proj_kernel(%arg0: i32, %arg1: memref<16x32xbf16, #tpu.memory_space<vmem>>, %arg2: memref<32x16xbf16, #tpu.memory_space<vmem>>, %arg3: memref<32x16xbf16, #tpu.memory_space<vmem>>, %arg4: memref<32x16xbf16, #tpu.memory_space<vmem>>, %arg5: memref<16x16xbf16, #tpu.memory_space<vmem>>, %arg6: memref<16x16xbf16, #tpu.memory_space<vmem>>, %arg7: memref<16x16xbf16, #tpu.memory_space<vmem>>) attributes {dimension_semantics = [#tpu.dimension_semantics<parallel>], iteration_bounds = array<i64: 1>, scalar_prefetch = 0 : i64, scratch_operands = 0 : i64, tpu.core_type = #tpu.core_type<tc>, window_params = [{transform_indices = @transform_0, window_bounds = array<i64: 16, 32>}, {pipeline_mode = #tpu.pipeline_mode<synchronous>, transform_indices = @transform_1, window_bounds = array<i64: 32, 16>}, {pipeline_mode = #tpu.pipeline_mode<synchronous>, transform_indices = @transform_2, window_bounds = array<i64: 32, 16>}, {pipeline_mode = #tpu.pipeline_mode<synchronous>, transform_indices = @transform_3, window_bounds = array<i64: 32, 16>}, {transform_indices = @transform_4, window_bounds = array<i64: 16, 16>}, {transform_indices = @transform_5, window_bounds = array<i64: 16, 16>}, {transform_indices = @transform_6, window_bounds = array<i64: 16, 16>}]} {
    %c0 = arith.constant 0 : index
    %c0_0 = arith.constant 0 : index
    %0 = vector.load %arg1[%c0, %c0_0] : memref<16x32xbf16, #tpu.memory_space<vmem>>, vector<16x32xbf16>
    %c0_1 = arith.constant 0 : index
    %c0_2 = arith.constant 0 : index
    %1 = vector.load %arg2[%c0_1, %c0_2] : memref<32x16xbf16, #tpu.memory_space<vmem>>, vector<32x16xbf16>
    %cst = arith.constant dense<0.000000e+00> : vector<16x16xf32>
    %2 = tpu.matmul %0, %1, %cst {dimension_numbers = #tpu.dot_dimension_numbers<[1], [0], [0], [1], [0, 0, 1, 1], [], []>} : vector<16x32xbf16>, vector<32x16xbf16>, vector<16x16xf32> -> vector<16x16xf32>
    %3 = arith.truncf %2 : vector<16x16xf32> to vector<16x16xbf16>
    %c0_3 = arith.constant 0 : index
    %c0_4 = arith.constant 0 : index
    %4 = vector.load %arg5[%c0_3, %c0_4] : memref<16x16xbf16, #tpu.memory_space<vmem>>, vector<16x16xbf16>
    tpu.vector_store %arg5[%c0_3, %c0_4], %3 {strides = array<i32>} : memref<16x16xbf16, #tpu.memory_space<vmem>>, vector<16x16xbf16>,
    %c0_5 = arith.constant 0 : index
    %c0_6 = arith.constant 0 : index
    %5 = vector.load %arg3[%c0_5, %c0_6] : memref<32x16xbf16, #tpu.memory_space<vmem>>, vector<32x16xbf16>
    %cst_7 = arith.constant dense<0.000000e+00> : vector<16x16xf32>
    %6 = tpu.matmul %0, %5, %cst_7 {dimension_numbers = #tpu.dot_dimension_numbers<[1], [0], [0], [1], [0, 0, 1, 1], [], []>} : vector<16x32xbf16>, vector<32x16xbf16>, vector<16x16xf32> -> vector<16x16xf32>
    %7 = arith.truncf %6 : vector<16x16xf32> to vector<16x16xbf16>
    %c0_8 = arith.constant 0 : index
    %c0_9 = arith.constant 0 : index
    %8 = vector.load %arg6[%c0_8, %c0_9] : memref<16x16xbf16, #tpu.memory_space<vmem>>, vector<16x16xbf16>
    tpu.vector_store %arg6[%c0_8, %c0_9], %7 {strides = array<i32>} : memref<16x16xbf16, #tpu.memory_space<vmem>>, vector<16x16xbf16>,
    %c0_10 = arith.constant 0 : index
    %c0_11 = arith.constant 0 : index
    %9 = vector.load %arg4[%c0_10, %c0_11] : memref<32x16xbf16, #tpu.memory_space<vmem>>, vector<32x16xbf16>
    %cst_12 = arith.constant dense<0.000000e+00> : vector<16x16xf32>
    %10 = tpu.matmul %0, %9, %cst_12 {dimension_numbers = #tpu.dot_dimension_numbers<[1], [0], [0], [1], [0, 0, 1, 1], [], []>} : vector<16x32xbf16>, vector<32x16xbf16>, vector<16x16xf32> -> vector<16x16xf32>
    %11 = arith.truncf %10 : vector<16x16xf32> to vector<16x16xbf16>
    %c0_13 = arith.constant 0 : index
    %c0_14 = arith.constant 0 : index
    %12 = vector.load %arg7[%c0_13, %c0_14] : memref<16x16xbf16, #tpu.memory_space<vmem>>, vector<16x16xbf16>
    tpu.vector_store %arg7[%c0_13, %c0_14], %11 {strides = array<i32>} : memref<16x16xbf16, #tpu.memory_space<vmem>>, vector<16x16xbf16>,
    return
  }
  func.func @transform_0(%arg0: i32) -> (i32, i32) {
    %c0_i32 = arith.constant 0 : i32
    %c0_i32_0 = arith.constant 0 : i32
    return %arg0, %c0_i32 : i32, i32
  }
  func.func @transform_1(%arg0: i32) -> (i32, i32) {
    %c0_i32 = arith.constant 0 : i32
    %c0_i32_0 = arith.constant 0 : i32
    %c0_i32_1 = arith.constant 0 : i32
    return %c0_i32, %c0_i32_0 : i32, i32
  }
  func.func @transform_2(%arg0: i32) -> (i32, i32) {
    %c0_i32 = arith.constant 0 : i32
    %c0_i32_0 = arith.constant 0 : i32
    %c0_i32_1 = arith.constant 0 : i32
    return %c0_i32, %c0_i32_0 : i32, i32
  }
  func.func @transform_3(%arg0: i32) -> (i32, i32) {
    %c0_i32 = arith.constant 0 : i32
    %c0_i32_0 = arith.constant 0 : i32
    %c0_i32_1 = arith.constant 0 : i32
    return %c0_i32, %c0_i32_0 : i32, i32
  }
  func.func @transform_4(%arg0: i32) -> (i32, i32) {
    %c0_i32 = arith.constant 0 : i32
    %c0_i32_0 = arith.constant 0 : i32
    return %arg0, %c0_i32 : i32, i32
  }
  func.func @transform_5(%arg0: i32) -> (i32, i32) {
    %c0_i32 = arith.constant 0 : i32
    %c0_i32_0 = arith.constant 0 : i32
    return %arg0, %c0_i32 : i32, i32
  }
  func.func @transform_6(%arg0: i32) -> (i32, i32) {
    %c0_i32 = arith.constant 0 : i32
    %c0_i32_0 = arith.constant 0 : i32
    return %arg0, %c0_i32 : i32, i32
  }
}

</mosaic_0001>

<llo_original>
// kernel: tpu_custom_call.1
$region0: #{tpu_custom_call.1}
  #allocation0 [shape = 'u32[]', space=smem, size = 0x4, offset = 0x4, fixed_abs, tag = 'smem constant byte address 0x4 - core index']
  #allocation1 [shape = 'u32[144,128]{1,0:T(1,128)}', space=vmem, size = 0x12000, scoped, tag = 'internal scratch']
  %s0 = inlined_call_operand.vmem [shape: bf16[16,32], index: 0, kind: input, shape index: {}]
  %s1 = inlined_call_operand.vmem [shape: bf16[32,16], index: 1, kind: input, shape index: {}]
  %s2 = inlined_call_operand.vmem [shape: bf16[32,16], index: 2, kind: input, shape index: {}]
  %s3 = inlined_call_operand.vmem [shape: bf16[32,16], index: 3, kind: input, shape index: {}]
  %s4 = inlined_call_operand.hbm [shape: bf16[16,16], index: 4, kind: output, shape index: {0}]
  %s5 = inlined_call_operand.hbm [shape: bf16[16,16], index: 5, kind: output, shape index: {1}]
  %s6 = inlined_call_operand.hbm [shape: bf16[16,16], index: 6, kind: output, shape index: {2}]
  %7 = xla_tuple %s4, %s5, %s6
  %s8 = sld [smem:[#allocation0]]
  $region42: #{tpu_custom_call.1} parent=0
    _
  %s10 = ssub.s32 1, %s8
  %s11 = scalar_select 0, %s10, %s8
  $region1: #{tpu_custom_call.1} parent=0
    #allocation2 [shape = 'u8[4096]{0}', space=vmem, size = 0x1000, scoped, tag = 'output window, operand 0, single buffered']
    #allocation3 [shape = 's32[1]{0}', space=sflag, size = 0x4, scoped, tag = 'scoped memory for tpu_custom_call.1']
    #allocation4 [shape = 'u8[4096]{0}', space=vmem, size = 0x1000, scoped, tag = 'output window, operand 1, single buffered']
    #allocation5 [shape = 's32[1]{0}', space=sflag, size = 0x4, scoped, tag = 'scoped memory for tpu_custom_call.1']
    #allocation6 [shape = 'u8[4096]{0}', space=vmem, size = 0x1000, scoped, tag = 'output window, operand 2, single buffered']
    %12 = vsyncpa [#allocation3], 0
    %13 = vsyncpa [#allocation5], 0
    // Predicated region
    $region2: #{tpu_custom_call.1} parent=1 // pred_check
      _
    $region3: #{tpu_custom_call.1} parent=1 // pred_check_branch
      %15 = sbr.rel (0) target = $region5
    $region4: #{tpu_custom_call.1} parent=1 // pred_region
      _
    $region5: #{tpu_custom_call.1} parent=1 // pred_fallthru
      _
    // Predicated region
    $region6: #{tpu_custom_call.1} parent=1 // pred_check
      _
    $region7: #{tpu_custom_call.1} parent=1 // pred_check_branch
      %17 = sbr.rel (0) target = $region9
    $region8: #{tpu_custom_call.1} parent=1 // pred_region
      _
    $region9: #{tpu_custom_call.1} parent=1 // pred_fallthru
      _
    // Predicated region
    $region10: #{tpu_custom_call.1} parent=1 // pred_check
      _
    $region11: #{tpu_custom_call.1} parent=1 // pred_check_branch
      %19 = sbr.rel (0) target = $region13
    $region12: #{tpu_custom_call.1} parent=1 // pred_region
      _
    $region13: #{tpu_custom_call.1} parent=1 // pred_fallthru
      _
    // Predicated region
    $region14: #{tpu_custom_call.1} parent=1 // pred_check
      _
    $region15: #{tpu_custom_call.1} parent=1 // pred_check_branch
      %21 = sbr.rel (0) target = $region17
    $region16: #{tpu_custom_call.1} parent=1 // pred_region
      _
    $region17: #{tpu_custom_call.1} parent=1 // pred_fallthru
      _
    %v23 = vld [vmem:[%s0] sm:$0xf]
    %v24 = vld [vmem:[%s0 + $0x4] sm:$0xf]
    %v25 = vld [vmem:[%s1] sm:$0xf]
    %v26 = vld [vmem:[%s1 + $0x4] sm:$0xf]
    %v27 = vld [vmem:[%s1 + $0x8] sm:$0xf]
    %v28 = vld [vmem:[%s1 + $0xc] sm:$0xf]
    %v31 = vunpack.c.l.b16 %v23
    %v32 = vunpack.c.l.b16 %v24
    %v33 = vpack.c.b16 %v32, %v31
    %v38 = vunpack.c.l.b16 %v25
    %v39 = vunpack.c.l.b16 %v26
    %v40 = vunpack.c.l.b16 %v27
    %v41 = vunpack.c.l.b16 %v28
    %v42 = vpack.c.b16 %v39, %v38
    %v43 = vpack.c.b16 %v41, %v40
    %vm46 = vcmask 261120
    %v48 = vsel %vm46, %v33, 0
    %50 = vmatprep.subr.bf16.mxu0 0
    %51 = vmatpush1.bf16.msra.mxu0 %v42
    %52 = vmatprep.subr.bf16.mxu0 0
    %53 = vmatpush1.bf16.msra.mxu0 %v43
    %54 = vmatprep.subr.bf16.mxu0 0
    %55 = vmatpush1.bf16.msra.mxu0 0
    %56 = vmatprep.subr.bf16.mxu0 0
    %57 = vmatpush1.bf16.msra.mxu0 0
    %58 = vmatprep.subr.bf16.mxu0 0
    %59 = vmatpush1.bf16.msra.mxu0 0
    %60 = vmatprep.subr.bf16.mxu0 0
    %61 = vmatpush1.bf16.msra.mxu0 0
    %62 = vmatprep.subr.bf16.mxu0 0
    %63 = vmatpush1.bf16.msra.mxu0 0
    %64 = vmatprep.subr.bf16.mxu0 0
    %65 = vmatpush1.bf16.msra.mxu0 0
    %66 = vmatprep.subr.bf16.mxu0 0
    %67 = vmatpush1.bf16.msra.mxu0 0
    %68 = vmatprep.subr.bf16.mxu0 0
    %69 = vmatpush1.bf16.msra.mxu0 0
    %70 = vmatprep.subr.bf16.mxu0 0
    %71 = vmatpush1.bf16.msra.mxu0 0
    %72 = vmatprep.subr.bf16.mxu0 0
    %73 = vmatpush1.bf16.msra.mxu0 0
    %74 = vmatprep.subr.bf16.mxu0 0
    %75 = vmatpush1.bf16.msra.mxu0 0
    %76 = vmatprep.subr.bf16.mxu0 0
    %77 = vmatpush1.bf16.msra.mxu0 0
    %78 = vmatprep.subr.bf16.mxu0 0
    %79 = vmatpush1.bf16.msra.mxu0 0
    %80 = vmatprep.subr.bf16.mxu0 0
    %81 = vmatpush1.bf16.msra.mxu0 0
    %82 = vmatprep.mubr.bf16.mxu0 0
    %83 = vmatmul.mubr.bf16.gmra.mrb[0].mxu0 %v48
    %v84 = vpop.f32.mrb[0].mxu0
    %v85 = vadd.f32 0.0, %v84
    %v86 = vpop.f32.mrb[0].mxu0
    %v87 = vpop.f32.mrb[0].mxu0
    %v88 = vadd.f32 0.0, %v87
    %v89 = vpop.f32.mrb[0].mxu0
    %90 = vdwg.mxu0
    %v91 = vpack.c.bf16 %v88, %v85
    %v93 = vunpack.c.l.b16 %v91
    %v94 = vunpack.c.h.b16 %v91
    %v95 = vpack.c.b16 %v93, %v93
    %v96 = vpack.c.b16 %v94, %v94
    %vm99 = vcmask 125952
    %100 = vst.msk [vmem:[#allocation2] sm:$0xf] %vm99, %v95
    %101 = vst.msk [vmem:[#allocation2 + $0x4] sm:$0xf] %vm99, %v96
    %v102 = vld [vmem:[%s2] sm:$0xf]
    %v103 = vld [vmem:[%s2 + $0x4] sm:$0xf]
    %v104 = vld [vmem:[%s2 + $0x8] sm:$0xf]
    %v105 = vld [vmem:[%s2 + $0xc] sm:$0xf]
    %v110 = vunpack.c.l.b16 %v102
    %v111 = vunpack.c.l.b16 %v103
    %v112 = vunpack.c.l.b16 %v104
    %v113 = vunpack.c.l.b16 %v105
    %v114 = vpack.c.b16 %v111, %v110
    %v115 = vpack.c.b16 %v113, %v112
    %118 = vmatprep.subr.bf16.mxu0 0
    %119 = vmatpush1.bf16.msra.mxu0 %v114
    %120 = vmatprep.subr.bf16.mxu0 0
    %121 = vmatpush1.bf16.msra.mxu0 %v115
    %122 = vmatprep.subr.bf16.mxu0 0
    %123 = vmatpush1.bf16.msra.mxu0 0
    %124 = vmatprep.subr.bf16.mxu0 0
    %125 = vmatpush1.bf16.msra.mxu0 0
    %126 = vmatprep.subr.bf16.mxu0 0
    %127 = vmatpush1.bf16.msra.mxu0 0
    %128 = vmatprep.subr.bf16.mxu0 0
    %129 = vmatpush1.bf16.msra.mxu0 0
    %130 = vmatprep.subr.bf16.mxu0 0
    %131 = vmatpush1.bf16.msra.mxu0 0
    %132 = vmatprep.subr.bf16.mxu0 0
    %133 = vmatpush1.bf16.msra.mxu0 0
    %134 = vmatprep.subr.bf16.mxu0 0
    %135 = vmatpush1.bf16.msra.mxu0 0
    %136 = vmatprep.subr.bf16.mxu0 0
    %137 = vmatpush1.bf16.msra.mxu0 0
    %138 = vmatprep.subr.bf16.mxu0 0
    %139 = vmatpush1.bf16.msra.mxu0 0
    %140 = vmatprep.subr.bf16.mxu0 0
    %141 = vmatpush1.bf16.msra.mxu0 0
    %142 = vmatprep.subr.bf16.mxu0 0
    %143 = vmatpush1.bf16.msra.mxu0 0
    %144 = vmatprep.subr.bf16.mxu0 0
    %145 = vmatpush1.bf16.msra.mxu0 0
    %146 = vmatprep.subr.bf16.mxu0 0
    %147 = vmatpush1.bf16.msra.mxu0 0
    %148 = vmatprep.subr.bf16.mxu0 0
    %149 = vmatpush1.bf16.msra.mxu0 0
    %150 = vmatprep.mubr.bf16.mxu0 0
    %151 = vmatmul.mubr.bf16.gmra.mrb[0].mxu0 %v48
    %v152 = vpop.f32.mrb[0].mxu0
    %v153 = vadd.f32 0.0, %v152
    %v154 = vpop.f32.mrb[0].mxu0
    %v155 = vpop.f32.mrb[0].mxu0
    %v156 = vadd.f32 0.0, %v155
    %v157 = vpop.f32.mrb[0].mxu0
    %158 = vdwg.mxu0
    %v159 = vpack.c.bf16 %v156, %v153
    %v161 = vunpack.c.l.b16 %v159
    %v162 = vunpack.c.h.b16 %v159
    %v163 = vpack.c.b16 %v161, %v161
    %v164 = vpack.c.b16 %v162, %v162
    %167 = vst.msk [vmem:[#allocation4] sm:$0xf] %vm99, %v163
    %168 = vst.msk [vmem:[#allocation4 + $0x4] sm:$0xf] %vm99, %v164
    %v169 = vld [vmem:[%s3] sm:$0xf]
    %v170 = vld [vmem:[%s3 + $0x4] sm:$0xf]
    %v171 = vld [vmem:[%s3 + $0x8] sm:$0xf]
    %v172 = vld [vmem:[%s3 + $0xc] sm:$0xf]
    %v177 = vunpack.c.l.b16 %v169
    %v178 = vunpack.c.l.b16 %v170
    %v179 = vunpack.c.l.b16 %v171
    %v180 = vunpack.c.l.b16 %v172
    %v181 = vpack.c.b16 %v178, %v177
    %v182 = vpack.c.b16 %v180, %v179
    %185 = vmatprep.subr.bf16.mxu0 0
    %186 = vmatpush1.bf16.msra.mxu0 %v181
    %187 = vmatprep.subr.bf16.mxu0 0
    %188 = vmatpush1.bf16.msra.mxu0 %v182
    %189 = vmatprep.subr.bf16.mxu0 0
    %190 = vmatpush1.bf16.msra.mxu0 0
    %191 = vmatprep.subr.bf16.mxu0 0
    %192 = vmatpush1.bf16.msra.mxu0 0
    %193 = vmatprep.subr.bf16.mxu0 0
    %194 = vmatpush1.bf16.msra.mxu0 0
    %195 = vmatprep.subr.bf16.mxu0 0
    %196 = vmatpush1.bf16.msra.mxu0 0
    %197 = vmatprep.subr.bf16.mxu0 0
    %198 = vmatpush1.bf16.msra.mxu0 0
    %199 = vmatprep.subr.bf16.mxu0 0
    %200 = vmatpush1.bf16.msra.mxu0 0
    %201 = vmatprep.subr.bf16.mxu0 0
    %202 = vmatpush1.bf16.msra.mxu0 0
    %203 = vmatprep.subr.bf16.mxu0 0
    %204 = vmatpush1.bf16.msra.mxu0 0
    %205 = vmatprep.subr.bf16.mxu0 0
    %206 = vmatpush1.bf16.msra.mxu0 0
    %207 = vmatprep.subr.bf16.mxu0 0
    %208 = vmatpush1.bf16.msra.mxu0 0
    %209 = vmatprep.subr.bf16.mxu0 0
    %210 = vmatpush1.bf16.msra.mxu0 0
    %211 = vmatprep.subr.bf16.mxu0 0
    %212 = vmatpush1.bf16.msra.mxu0 0
    %213 = vmatprep.subr.bf16.mxu0 0
    %214 = vmatpush1.bf16.msra.mxu0 0
    %215 = vmatprep.subr.bf16.mxu0 0
    %216 = vmatpush1.bf16.msra.mxu0 0
    %217 = vmatprep.mubr.bf16.mxu0 0
    %218 = vmatmul.mubr.bf16.gmra.mrb[0].mxu0 %v48
    %v219 = vpop.f32.mrb[0].mxu0
    %v220 = vadd.f32 0.0, %v219
    %v221 = vpop.f32.mrb[0].mxu0
    %v222 = vpop.f32.mrb[0].mxu0
    %v223 = vadd.f32 0.0, %v222
    %v224 = vpop.f32.mrb[0].mxu0
    %225 = vdwg.mxu0
    %v226 = vpack.c.bf16 %v223, %v220
    %v228 = vunpack.c.l.b16 %v226
    %v229 = vunpack.c.h.b16 %v226
    %v230 = vpack.c.b16 %v228, %v228
    %v231 = vpack.c.b16 %v229, %v229
    %234 = vst.msk [vmem:[#allocation6] sm:$0xf] %vm99, %v230
    %235 = vst.msk [vmem:[#allocation6 + $0x4] sm:$0xf] %vm99, %v231
    // Predicated region
    $region18: #{tpu_custom_call.1} parent=1 // pred_check
      _
    $region19: #{tpu_custom_call.1} parent=1 // pred_check_branch
      %237 = sbr.rel (0) target = $region21
    $region20: #{tpu_custom_call.1} parent=1 // pred_region
      %s239 = ssub.s32 128, 128
      %240 = vsyncadd [#allocation3], %s239
      %s241 = sshll.u32 [#allocation2], 4
      %s242 = int_to_ptr.vmem [resolvable:$true] %s241
      %247 = dma.vmem_to_hbm [thread:$0]  %s242, 128, %s4, [#allocation3], 64, 64, 4
    $region21: #{tpu_custom_call.1} parent=1 // pred_fallthru
      _
    // Predicated region
    $region22: #{tpu_custom_call.1} parent=1 // pred_check
      _
    $region23: #{tpu_custom_call.1} parent=1 // pred_check_branch
      %249 = sbr.rel (0) target = $region25
    $region24: #{tpu_custom_call.1} parent=1 // pred_region
      %s251 = ssub.s32 128, 128
      %252 = vsyncadd [#allocation5], %s251
      %s253 = sshll.u32 [#allocation4], 4
      %s254 = int_to_ptr.vmem [resolvable:$true] %s253
      %259 = dma.vmem_to_hbm [thread:$0]  %s254, 128, %s5, [#allocation5], 64, 64, 4
    $region25: #{tpu_custom_call.1} parent=1 // pred_fallthru
      _
    // Predicated region
    $region26: #{tpu_custom_call.1} parent=1 // pred_check
      _
    $region27: #{tpu_custom_call.1} parent=1 // pred_check_branch
      %261 = sbr.rel (0) target = $region29
    $region28: #{tpu_custom_call.1} parent=1 // pred_region
      %s263 = ssub.s32 128, 128
      %264 = vsyncadd [#allocation5], %s263
      %s265 = sshll.u32 [#allocation6], 4
      %s266 = int_to_ptr.vmem [resolvable:$true] %s265
      %271 = dma.vmem_to_hbm [thread:$0]  %s266, 128, %s6, [#allocation5], 64, 64, 4
    $region29: #{tpu_custom_call.1} parent=1 // pred_fallthru
      _
    // Predicated region
    $region30: #{tpu_custom_call.1} parent=1 // pred_check
      _
    $region31: #{tpu_custom_call.1} parent=1 // pred_check_branch
      %273 = sbr.rel (0) target = $region33
    $region32: #{tpu_custom_call.1} parent=1 // pred_region
      %274 = dma.done [#allocation3], 128
    $region33: #{tpu_custom_call.1} parent=1 // pred_fallthru
      _
    // Predicated region
    $region34: #{tpu_custom_call.1} parent=1 // pred_check
      _
    $region35: #{tpu_custom_call.1} parent=1 // pred_check_branch
      %276 = sbr.rel (0) target = $region37
    $region36: #{tpu_custom_call.1} parent=1 // pred_region
      %277 = dma.done [#allocation5], 128
    $region37: #{tpu_custom_call.1} parent=1 // pred_fallthru
      _
    // Predicated region
    $region38: #{tpu_custom_call.1} parent=1 // pred_check
      _
    $region39: #{tpu_custom_call.1} parent=1 // pred_check_branch
      %279 = sbr.rel (0) target = $region41
    $region40: #{tpu_custom_call.1} parent=1 // pred_region
      %280 = dma.done [#allocation5], 128
    $region41: #{tpu_custom_call.1} parent=1 // pred_fallthru
      _
    %281 = vsyncpa [#allocation3], 1
    %282 = vsyncpa [#allocation5], 1

</llo_original>
